<compile_context>
chip_gen: v5e
topology: v5e:2x2
jax: 0.10.0
libtpu: 0.0.40
codegen_flags: <defaults>
</compile_context>

<pallas_src>
import functools

import jax
import jax.numpy as jnp
from jax.experimental import pallas as pl
from jax.experimental.pallas import tpu as pltpu

DEFAULT_DT = 0.01
DEFAULT_RF_THETA = 1.0
DEFAULT_RF_ADAPTIVE_B_OFFSET_A = 1.0
DEFAULT_RF_ADAPTIVE_B_OFFSET_B = 6.0
DEFAULT_RF_ADAPTIVE_OMEGA_A = 10.0
DEFAULT_RF_ADAPTIVE_OMEGA_B = 50.0

_LANE = 128
_SUBLANE = 8


def _round_up(n, m):
    return (n + m - 1) // m * m


def _pick_h_tile(h_pad, max_tile=512):
    """Largest multiple of 128 that divides h_pad and is <= max_tile."""
    best = _LANE
    t = _LANE
    while t <= min(h_pad, max_tile):
        if h_pad % t == 0:
            best = t
        t += _LANE
    return best


# --------------------------------------------------------------------------
# Fused HRF recurrence over T timesteps (projection matmul done in-kernel).
# Grid = (n_h, T): hidden tiles parallel, time sequential.  State resident in
# VMEM scratch for the duration of the time loop of each hidden tile.
# --------------------------------------------------------------------------
def _hrf_scan_kernel(x_ref, w_ref, osq_ref, bconst_ref, s0_ref,
                     z_out, state_out, u_sc, v_sc, rp_sc, *, dt, theta):
    t = pl.program_id(1)

    @pl.when(t == 0)
    def _init():
        u_sc[...] = s0_ref[0, :, :]
        v_sc[...] = s0_ref[1, :, :]
        rp_sc[...] = s0_ref[2, :, :]

    # Input projection for this timestep / hidden tile (MXU, otherwise idle).
    in_sum = jnp.dot(x_ref[0, :, :], w_ref[...],
                     preferred_element_type=jnp.float32)   # [B_pad, tile_h]

    omega_sq = osq_ref[...]      # [1, tile_h] (loop-invariant, resident)
    b_const = bconst_ref[...]    # [1, tile_h] = |omega|^2*0.005 + |b_offset|

    u = u_sc[...]
    v = v_sc[...]
    rp = rp_sc[...]

    # b = |omega|^2*0.005 + |b_offset| + ref_period
    b = b_const + rp

    # hrf_update: v updated first, u uses NEW v and OLD u.
    v_new = v + u * dt
    u_new = u + in_sum * dt - b * u * (2.0 * dt) - omega_sq * v_new * dt

    # StepDoubleGaussianGrad forward == Heaviside (surrogate grad is backward-only).
    z = (u_new - theta - rp > 0.0).astype(jnp.float32)
    rp_new = rp * 0.9 + z

    u_sc[...] = u_new
    v_sc[...] = v_new
    rp_sc[...] = rp_new

    z_out[0, :, :] = z

    @pl.when(t == pl.num_programs(1) - 1)
    def _finalize():
        state_out[0, :, :] = u_new
        state_out[1, :, :] = v_new
        state_out[2, :, :] = rp_new


def hrf_cell_sequence(x_seq, weight_t, omega, b_offset, state,
                      dt=DEFAULT_DT, theta=DEFAULT_RF_THETA):
    """Apply HRFCell.forward over a sequence of T timesteps.

    x_seq    : [T, B, input_size] float32
    weight_t : [input_size, layer_size] float32 (torch linear.weight transposed)
    omega    : [layer_size] float32
    b_offset : [layer_size] float32
    state    : (z, u, v, ref_period), each [B, layer_size] float32 (z unused)
    returns  : (z_seq [T, B, layer_size], (z, u, v, ref_period) final state)
    """
    _, u0, v0, rp0 = state              # z component of state is never read
    T, B, K = x_seq.shape
    H = u0.shape[-1]

    B_pad = _round_up(B, _SUBLANE)
    H_pad = _round_up(H, _LANE)
    tile_h = _pick_h_tile(H_pad)
    n_h = H_pad // tile_h

    # --- pad parameters / state to vreg-aligned shapes (padding stays zero) ---
    w_p = jnp.zeros((K, H_pad), jnp.float32).at[:, :H].set(weight_t)
    om_abs = jnp.abs(omega)
    omega_sq = jnp.zeros((1, H_pad), jnp.float32).at[0, :H].set(om_abs * om_abs)
    b_const = jnp.zeros((1, H_pad), jnp.float32).at[0, :H].set(
        om_abs * om_abs * 0.005 + jnp.abs(b_offset))

    state0 = (jnp.zeros((3, B_pad, H_pad), jnp.float32)
              .at[0, :B, :H].set(u0)
              .at[1, :B, :H].set(v0)
              .at[2, :B, :H].set(rp0))

    x_p = jnp.zeros((T, B_pad, K), jnp.float32).at[:, :B, :].set(x_seq)

    kernel = functools.partial(_hrf_scan_kernel, dt=float(dt), theta=float(theta))
    z_seq_p, state_p = pl.pallas_call(
        kernel,
        out_shape=(jax.ShapeDtypeStruct((T, B_pad, H_pad), jnp.float32),
                   jax.ShapeDtypeStruct((3, B_pad, H_pad), jnp.float32)),
        grid_spec=pltpu.PrefetchScalarGridSpec(
            num_scalar_prefetch=0,
            grid=(n_h, T),
            in_specs=[
                pl.BlockSpec((1, B_pad, K), lambda h, t: (t, 0, 0)),       # x[t]
                pl.BlockSpec((K, tile_h), lambda h, t: (0, h)),            # W tile (resident)
                pl.BlockSpec((1, tile_h), lambda h, t: (0, h)),            # omega^2 (resident)
                pl.BlockSpec((1, tile_h), lambda h, t: (0, h)),            # b_const (resident)
                pl.BlockSpec((3, B_pad, tile_h), lambda h, t: (0, 0, h)),  # packed init state
            ],
            out_specs=(
                pl.BlockSpec((1, B_pad, tile_h), lambda h, t: (t, 0, h)),  # z per step
                pl.BlockSpec((3, B_pad, tile_h), lambda h, t: (0, 0, h)),  # packed final state
            ),
            scratch_shapes=[pltpu.VMEM((B_pad, tile_h), jnp.float32)] * 3,
        ),
        compiler_params=pltpu.CompilerParams(
            dimension_semantics=("parallel", "arbitrary")),
    )(x_p, w_p, omega_sq, b_const, state0)

    z_seq = z_seq_p[:, :B, :H]
    u_f = state_p[0, :B, :H]
    v_f = state_p[1, :B, :H]
    rp_f = state_p[2, :B, :H]
    return z_seq, (z_seq[-1], u_f, v_f, rp_f)


def hrf_cell_forward(x, weight_t, omega, b_offset, state,
                     dt=DEFAULT_DT, theta=DEFAULT_RF_THETA):
    """Single-step HRFCell.forward (matches the PyTorch module signature)."""
    _, (z, u, v, rp) = hrf_cell_sequence(x[None], weight_t, omega, b_offset,
                                         state, dt, theta)
    return z, u, v, rp


# --------------------------------------------------------------------------
# Helpers / reference / test
# --------------------------------------------------------------------------
def _init_params(key, input_size, layer_size):
    """Deterministic parameter init mirroring HRFCell.__init__ distributions."""
    k_w, k_om, k_bo = jax.random.split(key, 3)
    bound = (6.0 / (input_size + layer_size)) ** 0.5        # xavier_uniform_
    w = jax.random.uniform(k_w, (layer_size, input_size), jnp.float32,
                           minval=-bound, maxval=bound)
    weight_t = w.T                                          # [input_size, layer_size]
    omega = jax.random.uniform(k_om, (layer_size,), jnp.float32,
                               minval=DEFAULT_RF_ADAPTIVE_OMEGA_A,
                               maxval=DEFAULT_RF_ADAPTIVE_OMEGA_B)
    b_offset = jax.random.uniform(k_bo, (layer_size,), jnp.float32,
                                  minval=DEFAULT_RF_ADAPTIVE_B_OFFSET_A,
                                  maxval=DEFAULT_RF_ADAPTIVE_B_OFFSET_B)
    return weight_t, omega, b_offset


def _ref_sequence(x_seq, weight_t, omega, b_offset, state,
                  dt=DEFAULT_DT, theta=DEFAULT_RF_THETA):
    """Pure-JAX step-by-step reference matching the torch op order."""
    z, u, v, rp = state
    om = jnp.abs(omega)[None, :]
    bo = jnp.abs(b_offset)[None, :]
    zs = []
    for t in range(x_seq.shape[0]):
        in_sum = x_seq[t] @ weight_t
        b = om * om * 0.005 + bo + rp
        v = v + u * dt
        u = u + in_sum * dt - b * u * (2.0 * dt) - om * om * v * dt
        z = (u - theta - rp > 0.0).astype(jnp.float32)
        rp = rp * 0.9 + z
        zs.append(z)
    return jnp.stack(zs), (z, u, v, rp)


if __name__ == "__main__":
    key = jax.random.PRNGKey(0)
    batch = 2
    input_size = 16
    layer_size = 32
    seq_len = 8

    k_params, k_x, k_u, k_v, k_rp = jax.random.split(key, 5)
    weight_t, omega, b_offset = _init_params(k_params, input_size, layer_size)

    x_seq = jax.random.normal(k_x, (seq_len, batch, input_size), jnp.float32)
    z0 = jnp.zeros((batch, layer_size), jnp.float32)
    u0 = jax.random.normal(k_u, (batch, layer_size), jnp.float32)
    v0 = jax.random.normal(k_v, (batch, layer_size), jnp.float32) * 0.1
    rp0 = jnp.abs(jax.random.normal(k_rp, (batch, layer_size), jnp.float32)) * 0.1
    state0 = (z0, u0, v0, rp0)

    # Fused sequence kernel
    z_seq, (z_f, u_f, v_f, rp_f) = hrf_cell_sequence(
        x_seq, weight_t, omega, b_offset, state0)
    jax.block_until_ready((z_seq, u_f, v_f, rp_f))

    # Reference (step-by-step)
    z_seq_r, (z_r, u_r, v_r, rp_r) = _ref_sequence(
        x_seq, weight_t, omega, b_offset, state0)

    assert jnp.allclose(u_f, u_r, atol=1e-4, rtol=1e-4), "u mismatch"
    assert jnp.allclose(v_f, v_r, atol=1e-4, rtol=1e-4), "v mismatch"
    assert jnp.allclose(rp_f, rp_r, atol=1e-4, rtol=1e-4), "ref_period mismatch"
    assert jnp.allclose(z_seq, z_seq_r), "z sequence mismatch"

    # Single-step API (module-equivalent forward) check against one ref step
    z1, u1, v1, rp1 = hrf_cell_forward(x_seq[0], weight_t, omega, b_offset, state0)
    jax.block_until_ready((z1, u1, v1, rp1))
    z1_r_seq, (z1_r, u1_r, v1_r, rp1_r) = _ref_sequence(
        x_seq[:1], weight_t, omega, b_offset, state0)
    assert jnp.allclose(u1, u1_r, atol=1e-5), "single-step u mismatch"
    assert jnp.allclose(v1, v1_r, atol=1e-5), "single-step v mismatch"
    assert jnp.allclose(rp1, rp1_r, atol=1e-5), "single-step ref_period mismatch"
    assert jnp.allclose(z1, z1_r), "single-step z mismatch"

    # TODO(synk): StepDoubleGaussianGrad surrogate gradient (backward) is not
    # implemented; forward Heaviside only.
    print("KERNEL_OK")
</pallas_src>

<mosaic_0001>
module attributes {stable_mosaic.version = 11 : i64} {
  func.func @_hrf_scan_kernel(%arg0: i32, %arg1: i32, %arg2: memref<1x8x16xf32, #tpu.memory_space<vmem>>, %arg3: memref<16x128xf32, #tpu.memory_space<vmem>>, %arg4: memref<1x128xf32, #tpu.memory_space<vmem>>, %arg5: memref<1x128xf32, #tpu.memory_space<vmem>>, %arg6: memref<3x8x128xf32, #tpu.memory_space<vmem>>, %arg7: memref<1x8x128xf32, #tpu.memory_space<vmem>>, %arg8: memref<3x8x128xf32, #tpu.memory_space<vmem>>, %arg9: memref<8x128xf32, #tpu.memory_space<vmem>>, %arg10: memref<8x128xf32, #tpu.memory_space<vmem>>, %arg11: memref<8x128xf32, #tpu.memory_space<vmem>>) attributes {dimension_semantics = [#tpu.dimension_semantics<parallel>, #tpu.dimension_semantics<arbitrary>], iteration_bounds = array<i64: 1, 8>, scalar_prefetch = 0 : i64, scratch_operands = 3 : i64, tpu.core_type = #tpu.core_type<tc>, window_params = [{transform_indices = @transform_0, window_bounds = array<i64: 1, 8, 16>}, {transform_indices = @transform_1, window_bounds = array<i64: 16, 128>}, {transform_indices = @transform_2, window_bounds = array<i64: 1, 128>}, {transform_indices = @transform_3, window_bounds = array<i64: 1, 128>}, {transform_indices = @transform_4, window_bounds = array<i64: 3, 8, 128>}, {transform_indices = @transform_5, window_bounds = array<i64: 1, 8, 128>}, {transform_indices = @transform_6, window_bounds = array<i64: 3, 8, 128>}]} {
    %c0_i32 = arith.constant 0 : i32
    %0 = arith.cmpi eq, %arg1, %c0_i32 : i32
    %1 = arith.extui %0 : i1 to i32
    %c0_i32_0 = arith.constant 0 : i32
    %2 = arith.cmpi ne, %1, %c0_i32_0 : i32
    scf.if %2 {
      %c0_32 = arith.constant 0 : index
      %c0_33 = arith.constant 0 : index
      %c0_34 = arith.constant 0 : index
      %48 = vector.load %arg6[%c0_32, %c0_33, %c0_34] : memref<3x8x128xf32, #tpu.memory_space<vmem>>, vector<1x8x128xf32>
      %49 = vector.shape_cast %48 : vector<1x8x128xf32> to vector<8x128xf32>
      %c0_35 = arith.constant 0 : index
      %c0_36 = arith.constant 0 : index
      %50 = vector.load %arg9[%c0_35, %c0_36] : memref<8x128xf32, #tpu.memory_space<vmem>>, vector<8x128xf32>
      tpu.vector_store %arg9[%c0_35, %c0_36], %49 {strides = array<i32>} : memref<8x128xf32, #tpu.memory_space<vmem>>, vector<8x128xf32>,
      %c1 = arith.constant 1 : index
      %c0_37 = arith.constant 0 : index
      %c0_38 = arith.constant 0 : index
      %51 = vector.load %arg6[%c1, %c0_37, %c0_38] : memref<3x8x128xf32, #tpu.memory_space<vmem>>, vector<1x8x128xf32>
      %52 = vector.shape_cast %51 : vector<1x8x128xf32> to vector<8x128xf32>
      %c0_39 = arith.constant 0 : index
      %c0_40 = arith.constant 0 : index
      %53 = vector.load %arg10[%c0_39, %c0_40] : memref<8x128xf32, #tpu.memory_space<vmem>>, vector<8x128xf32>
      tpu.vector_store %arg10[%c0_39, %c0_40], %52 {strides = array<i32>} : memref<8x128xf32, #tpu.memory_space<vmem>>, vector<8x128xf32>,
      %c2 = arith.constant 2 : index
      %c0_41 = arith.constant 0 : index
      %c0_42 = arith.constant 0 : index
      %54 = vector.load %arg6[%c2, %c0_41, %c0_42] : memref<3x8x128xf32, #tpu.memory_space<vmem>>, vector<1x8x128xf32>
      %55 = vector.shape_cast %54 : vector<1x8x128xf32> to vector<8x128xf32>
      %c0_43 = arith.constant 0 : index
      %c0_44 = arith.constant 0 : index
      %56 = vector.load %arg11[%c0_43, %c0_44] : memref<8x128xf32, #tpu.memory_space<vmem>>, vector<8x128xf32>
      tpu.vector_store %arg11[%c0_43, %c0_44], %55 {strides = array<i32>} : memref<8x128xf32, #tpu.memory_space<vmem>>, vector<8x128xf32>,
    } else {
    }
    %c0 = arith.constant 0 : index
    %c0_1 = arith.constant 0 : index
    %c0_2 = arith.constant 0 : index
    %3 = vector.load %arg2[%c0, %c0_1, %c0_2] : memref<1x8x16xf32, #tpu.memory_space<vmem>>, vector<1x8x16xf32>
    %4 = vector.shape_cast %3 : vector<1x8x16xf32> to vector<8x16xf32>
    %c0_3 = arith.constant 0 : index
    %c0_4 = arith.constant 0 : index
    %5 = vector.load %arg3[%c0_3, %c0_4] : memref<16x128xf32, #tpu.memory_space<vmem>>, vector<16x128xf32>
    %cst = arith.constant dense<0.000000e+00> : vector<8x128xf32>
    %6 = tpu.matmul %4, %5, %cst {dimension_numbers = #tpu.dot_dimension_numbers<[1], [0], [0], [1], [0, 0, 1, 1], [], []>} : vector<8x16xf32>, vector<16x128xf32>, vector<8x128xf32> -> vector<8x128xf32>
    %c0_5 = arith.constant 0 : index
    %c0_6 = arith.constant 0 : index
    %7 = vector.load %arg4[%c0_5, %c0_6] : memref<1x128xf32, #tpu.memory_space<vmem>>, vector<1x128xf32>
    %c0_7 = arith.constant 0 : index
    %c0_8 = arith.constant 0 : index
    %8 = vector.load %arg5[%c0_7, %c0_8] : memref<1x128xf32, #tpu.memory_space<vmem>>, vector<1x128xf32>
    %c0_9 = arith.constant 0 : index
    %c0_10 = arith.constant 0 : index
    %9 = vector.load %arg9[%c0_9, %c0_10] : memref<8x128xf32, #tpu.memory_space<vmem>>, vector<8x128xf32>
    %c0_11 = arith.constant 0 : index
    %c0_12 = arith.constant 0 : index
    %10 = vector.load %arg10[%c0_11, %c0_12] : memref<8x128xf32, #tpu.memory_space<vmem>>, vector<8x128xf32>
    %c0_13 = arith.constant 0 : index
    %c0_14 = arith.constant 0 : index
    %11 = vector.load %arg11[%c0_13, %c0_14] : memref<8x128xf32, #tpu.memory_space<vmem>>, vector<8x128xf32>
    %12 = vector.broadcast %8 : vector<1x128xf32> to vector<8x128xf32>
    %13 = arith.addf %12, %11 : vector<8x128xf32>
    %cst_15 = arith.constant 0.00999999977 : f32
    %14 = vector.broadcast %cst_15 : f32 to vector<8x128xf32>
    %15 = arith.mulf %9, %14 : vector<8x128xf32>
    %16 = arith.addf %10, %15 : vector<8x128xf32>
    %cst_16 = arith.constant 0.00999999977 : f32
    %17 = vector.broadcast %cst_16 : f32 to vector<8x128xf32>
    %18 = arith.mulf %6, %17 : vector<8x128xf32>
    %19 = arith.addf %9, %18 : vector<8x128xf32>
    %20 = arith.mulf %13, %9 : vector<8x128xf32>
    %cst_17 = arith.constant 2.000000e-02 : f32
    %21 = vector.broadcast %cst_17 : f32 to vector<8x128xf32>
    %22 = arith.mulf %20, %21 : vector<8x128xf32>
    %23 = arith.subf %19, %22 : vector<8x128xf32>
    %24 = vector.broadcast %7 : vector<1x128xf32> to vector<8x128xf32>
    %25 = arith.mulf %24, %16 : vector<8x128xf32>
    %cst_18 = arith.constant 0.00999999977 : f32
    %26 = vector.broadcast %cst_18 : f32 to vector<8x128xf32>
    %27 = arith.mulf %25, %26 : vector<8x128xf32>
    %28 = arith.subf %23, %27 : vector<8x128xf32>
    %cst_19 = arith.constant 1.000000e+00 : f32
    %29 = vector.broadcast %cst_19 : f32 to vector<8x128xf32>
    %30 = arith.subf %28, %29 : vector<8x128xf32>
    %31 = arith.subf %30, %11 : vector<8x128xf32>
    %cst_20 = arith.constant 0.000000e+00 : f32
    %32 = vector.broadcast %cst_20 : f32 to vector<8x128xf32>
    %33 = arith.cmpf ogt, %31, %32 : vector<8x128xf32>
    %34 = arith.extui %33 : vector<8x128xi1> to vector<8x128xi32>
    %35 = arith.sitofp %34 : vector<8x128xi32> to vector<8x128xf32>
    %cst_21 = arith.constant 0.899999976 : f32
    %36 = vector.broadcast %cst_21 : f32 to vector<8x128xf32>
    %37 = arith.mulf %11, %36 : vector<8x128xf32>
    %38 = arith.addf %37, %35 : vector<8x128xf32>
    %c0_22 = arith.constant 0 : index
    %c0_23 = arith.constant 0 : index
    %39 = vector.load %arg9[%c0_22, %c0_23] : memref<8x128xf32, #tpu.memory_space<vmem>>, vector<8x128xf32>
    tpu.vector_store %arg9[%c0_22, %c0_23], %28 {strides = array<i32>} : memref<8x128xf32, #tpu.memory_space<vmem>>, vector<8x128xf32>,
    %c0_24 = arith.constant 0 : index
    %c0_25 = arith.constant 0 : index
    %40 = vector.load %arg10[%c0_24, %c0_25] : memref<8x128xf32, #tpu.memory_space<vmem>>, vector<8x128xf32>
    tpu.vector_store %arg10[%c0_24, %c0_25], %16 {strides = array<i32>} : memref<8x128xf32, #tpu.memory_space<vmem>>, vector<8x128xf32>,
    %c0_26 = arith.constant 0 : index
    %c0_27 = arith.constant 0 : index
    %41 = vector.load %arg11[%c0_26, %c0_27] : memref<8x128xf32, #tpu.memory_space<vmem>>, vector<8x128xf32>
    tpu.vector_store %arg11[%c0_26, %c0_27], %38 {strides = array<i32>} : memref<8x128xf32, #tpu.memory_space<vmem>>, vector<8x128xf32>,
    %c0_28 = arith.constant 0 : index
    %c0_29 = arith.constant 0 : index
    %c0_30 = arith.constant 0 : index
    %42 = vector.load %arg7[%c0_28, %c0_29, %c0_30] : memref<1x8x128xf32, #tpu.memory_space<vmem>>, vector<1x8x128xf32>
    %43 = vector.shape_cast %42 : vector<1x8x128xf32> to vector<8x128xf32>
    %44 = vector.shape_cast %35 : vector<8x128xf32> to vector<1x8x128xf32>
    tpu.vector_store %arg7[%c0_28, %c0_29, %c0_30], %44 {strides = array<i32>} : memref<1x8x128xf32, #tpu.memory_space<vmem>>, vector<1x8x128xf32>,
    %c7_i32 = arith.constant 7 : i32
    %45 = arith.cmpi eq, %arg1, %c7_i32 : i32
    %46 = arith.extui %45 : i1 to i32
    %c0_i32_31 = arith.constant 0 : i32
    %47 = arith.cmpi ne, %46, %c0_i32_31 : i32
    scf.if %47 {
      %c0_32 = arith.constant 0 : index
      %c0_33 = arith.constant 0 : index
      %c0_34 = arith.constant 0 : index
      %48 = vector.load %arg8[%c0_32, %c0_33, %c0_34] : memref<3x8x128xf32, #tpu.memory_space<vmem>>, vector<1x8x128xf32>
      %49 = vector.shape_cast %48 : vector<1x8x128xf32> to vector<8x128xf32>
      %50 = vector.shape_cast %28 : vector<8x128xf32> to vector<1x8x128xf32>
      tpu.vector_store %arg8[%c0_32, %c0_33, %c0_34], %50 {strides = array<i32>} : memref<3x8x128xf32, #tpu.memory_space<vmem>>, vector<1x8x128xf32>,
      %c1 = arith.constant 1 : index
      %c0_35 = arith.constant 0 : index
      %c0_36 = arith.constant 0 : index
      %51 = vector.load %arg8[%c1, %c0_35, %c0_36] : memref<3x8x128xf32, #tpu.memory_space<vmem>>, vector<1x8x128xf32>
      %52 = vector.shape_cast %51 : vector<1x8x128xf32> to vector<8x128xf32>
      %53 = vector.shape_cast %16 : vector<8x128xf32> to vector<1x8x128xf32>
      tpu.vector_store %arg8[%c1, %c0_35, %c0_36], %53 {strides = array<i32>} : memref<3x8x128xf32, #tpu.memory_space<vmem>>, vector<1x8x128xf32>,
      %c2 = arith.constant 2 : index
      %c0_37 = arith.constant 0 : index
      %c0_38 = arith.constant 0 : index
      %54 = vector.load %arg8[%c2, %c0_37, %c0_38] : memref<3x8x128xf32, #tpu.memory_space<vmem>>, vector<1x8x128xf32>
      %55 = vector.shape_cast %54 : vector<1x8x128xf32> to vector<8x128xf32>
      %56 = vector.shape_cast %38 : vector<8x128xf32> to vector<1x8x128xf32>
      tpu.vector_store %arg8[%c2, %c0_37, %c0_38], %56 {strides = array<i32>} : memref<3x8x128xf32, #tpu.memory_space<vmem>>, vector<1x8x128xf32>,
    } else {
    }
    return
  }
  func.func @transform_0(%arg0: i32, %arg1: i32) -> (i32, i32, i32) {
    %c0_i32 = arith.constant 0 : i32
    %c0_i32_0 = arith.constant 0 : i32
    %c0_i32_1 = arith.constant 0 : i32
    return %arg1, %c0_i32, %c0_i32_0 : i32, i32, i32
  }
  func.func @transform_1(%arg0: i32, %arg1: i32) -> (i32, i32) {
    %c0_i32 = arith.constant 0 : i32
    %c0_i32_0 = arith.constant 0 : i32
    return %c0_i32, %arg0 : i32, i32
  }
  func.func @transform_2(%arg0: i32, %arg1: i32) -> (i32, i32) {
    %c0_i32 = arith.constant 0 : i32
    %c0_i32_0 = arith.constant 0 : i32
    return %c0_i32, %arg0 : i32, i32
  }
  func.func @transform_3(%arg0: i32, %arg1: i32) -> (i32, i32) {
    %c0_i32 = arith.constant 0 : i32
    %c0_i32_0 = arith.constant 0 : i32
    return %c0_i32, %arg0 : i32, i32
  }
  func.func @transform_4(%arg0: i32, %arg1: i32) -> (i32, i32, i32) {
    %c0_i32 = arith.constant 0 : i32
    %c0_i32_0 = arith.constant 0 : i32
    %c0_i32_1 = arith.constant 0 : i32
    return %c0_i32, %c0_i32_0, %arg0 : i32, i32, i32
  }
  func.func @transform_5(%arg0: i32, %arg1: i32) -> (i32, i32, i32) {
    %c0_i32 = arith.constant 0 : i32
    %c0_i32_0 = arith.constant 0 : i32
    return %arg1, %c0_i32, %arg0 : i32, i32, i32
  }
  func.func @transform_6(%arg0: i32, %arg1: i32) -> (i32, i32, i32) {
    %c0_i32 = arith.constant 0 : i32
    %c0_i32_0 = arith.constant 0 : i32
    %c0_i32_1 = arith.constant 0 : i32
    return %c0_i32, %c0_i32_0, %arg0 : i32, i32, i32
  }
}

</mosaic_0001>

<llo_original>
// kernel: tpu_custom_call.1
$region0: #{tpu_custom_call.1}
  #allocation0 [shape = 'u32[]', space=smem, size = 0x4, offset = 0x4, fixed_abs, tag = 'smem constant byte address 0x4 - core index']
  #allocation1 [shape = 'u32[72,128]{1,0:T(1,128)}', space=vmem, size = 0x9000, scoped, tag = 'internal scratch']
  #allocation2 [shape = 'f32[8,128]{1,0:T(8,128)}', space=vmem, size = 0x1000, scoped, tag = 'scratch operand']
  #allocation3 [shape = 'f32[8,128]{1,0:T(8,128)}', space=vmem, size = 0x1000, scoped, tag = 'scratch operand']
  #allocation4 [shape = 'f32[8,128]{1,0:T(8,128)}', space=vmem, size = 0x1000, scoped, tag = 'scratch operand']
  %s0 = inlined_call_operand.hbm [shape: f32[8,8,16], index: 0, kind: input, shape index: {}]
  %s1 = inlined_call_operand.hbm [shape: f32[16,128], index: 1, kind: input, shape index: {}]
  %s2 = inlined_call_operand.vmem [shape: f32[1,128], index: 2, kind: input, shape index: {}]
  %s3 = inlined_call_operand.vmem [shape: f32[1,128], index: 3, kind: input, shape index: {}]
  %s4 = inlined_call_operand.hbm [shape: f32[3,8,128], index: 4, kind: input, shape index: {}]
  %s5 = inlined_call_operand.hbm [shape: f32[8,8,128], index: 5, kind: output, shape index: {0}]
  %s6 = inlined_call_operand.hbm [shape: f32[3,8,128], index: 6, kind: output, shape index: {1}]
  %7 = xla_tuple %s5, %s6
  %s8 = sld [smem:[#allocation0]]
  $region81: #{tpu_custom_call.1} parent=0
    _
  %s10 = ssub.s32 1, %s8
  %s11 = scalar_select 0, %s10, %s8
  $region1: #{tpu_custom_call.1} parent=0
    #allocation5 [shape = 'u8[8192]{0}', space=vmem, size = 0x2000, scoped, tag = 'input window, operand 0']
    #allocation6 [shape = 's32[2]{0}', space=sflag, size = 0x8, scoped, tag = 'scoped memory for tpu_custom_call.1']
    #allocation7 [shape = 's32[2]{0}', space=sflag, size = 0x8, scoped, tag = 'scoped memory for tpu_custom_call.1']
    #allocation8 [shape = 'u8[8192]{0}', space=vmem, size = 0x2000, scoped, tag = 'input window, operand 1, single buffered']
    #allocation9 [shape = 's32[1]{0}', space=sflag, size = 0x4, scoped, tag = 'scoped memory for tpu_custom_call.1']
    #allocation10 [shape = 'u8[12288]{0}', space=vmem, size = 0x3000, scoped, tag = 'input window, operand 4, single buffered']
    #allocation11 [shape = 'u8[8192]{0}', space=vmem, size = 0x2000, scoped, tag = 'output window, operand 0']
    #allocation12 [shape = 'u8[12288]{0}', space=vmem, size = 0x3000, scoped, tag = 'output window, operand 1, single buffered']
    #allocation13 [shape = 's32[1]{0}', space=sflag, size = 0x4, scoped, tag = 'scoped memory for tpu_custom_call.1']
    %12 = vsyncpa [#allocation6], 0
    %s13 = scalar_lea.sflag [#allocation6], 1
    %14 = vsyncpa %s13, 0
    %15 = vsyncpa [#allocation9], 0
    %16 = vsyncpa [#allocation7], 0
    %s17 = scalar_lea.sflag [#allocation7], 1
    %18 = vsyncpa %s17, 0
    %19 = vsyncpa [#allocation13], 0
    loop: start=0, step=1, limit=10
    $region2: #{tpu_custom_call.1} parent=1 // loop_pre_header
      _
    $region3: #{tpu_custom_call.1} parent=1 // loop_header
      %s21 = sphi 0, %s25
      %p22 = scmp.ge.s32.totalorder %s21, 10
      %s28 = sphi 0, %s40
      %s29 = sphi 0, %s36
      %s30 = sphi 0, %s28
      %s31 = sphi 0, %s29
      %s32 = sphi 0, %s30
      %s33 = sphi 0, %s31
      %s43 = sphi 0, %s45
      %s46 = sphi 0, %s43
      %s47 = sphi 0, %s46
      %s63 = sphi 0, %s47
      %s69 = sphi 0, %s71
      %s72 = sphi 0, %s69
      %s73 = sphi 0, %s72
      %s89 = sphi 0, %s73
      %s95 = sphi 0, %s97
      %s98 = sphi 0, %s95
      %s99 = sphi 0, %s98
      %s115 = sphi 0, %s99
      %s121 = sphi 0, %s123
      %s124 = sphi 0, %s121
      %s125 = sphi 0, %s124
      %s141 = sphi 0, %s125
      %s147 = sphi 0, %s149
      %s150 = sphi 0, %s147
      %s151 = sphi 0, %s150
      %s167 = sphi 0, %s151
      %s175 = sphi 0, %s177
      %s178 = sphi 0, %s175
      %s179 = sphi 0, %s178
      %s195 = sphi 0, %s179
      %s201 = sphi 0, %s203
      %s204 = sphi 0, %s201
      %s205 = sphi 0, %s204
      %s221 = sphi 0, %s205
    $region4: #{tpu_custom_call.1} parent=1 // loop_header_branch
      %24 = sbr.rel (%p22) target = $region8
    $region5: #{tpu_custom_call.1} parent=1 // loop_body
      %s26 = ssub.s32 %s21, 1
      %s27 = ssub.s32 %s21, 2
      %s34 = sadd.s32 1, %s29
      %p35 = scmp.ge.s32.totalorder %s34, 8
      %s36 = scalar_select %p35, 0, %s34
      %s37 = sadd.s32 1, %s28
      %s38 = scalar_select %p35, %s37, %s28
      %p39 = scmp.ge.s32.totalorder %s38, 1
      %s40 = scalar_select %p39, 0, %s38
      %s41 = ssub.s32 %s29, %s36
      %p42 = scmp.eq.s32.totalorder %s41, 0
      %s44 = sadd.s32 %s43, 1
      %s45 = scalar_select %p42, %s43, %s44
      %p48 = pneg %p42
      %p49 = scmp.eq.s32.totalorder %s21, 7
      %p50 = por %p48, %p49
      %p51 = scmp.ne.s32.totalorder %s43, %s46
      %p52 = scmp.eq.s32.totalorder %s21, 0
      %p53 = por %p51, %p52
      %p54 = scmp.ne.s32.totalorder %s43, %s46
      %p55 = scmp.eq.s32.totalorder %s26, 7
      %p56 = por %p54, %p55
      %p57 = scmp.ne.s32.totalorder %s46, %s47
      %p58 = scmp.eq.s32.totalorder %s26, 0
      %p59 = por %p57, %p58
      %p60 = scmp.ne.s32.totalorder %s46, %s47
      %p61 = scmp.eq.s32.totalorder %s27, 7
      %p62 = por %p60, %p61
      %p64 = scmp.ne.s32.totalorder %s47, %s63
      %p65 = scmp.eq.s32.totalorder %s27, 0
      %p66 = por %p64, %p65
      %s67 = ssub.s32 %s28, %s40
      %p68 = scmp.eq.s32.totalorder %s67, 0
      %s70 = sadd.s32 %s69, 1
      %s71 = scalar_select %p68, %s69, %s70
      %p74 = pneg %p68
      %p75 = scmp.eq.s32.totalorder %s21, 7
      %p76 = por %p74, %p75
      %p77 = scmp.ne.s32.totalorder %s69, %s72
      %p78 = scmp.eq.s32.totalorder %s21, 0
      %p79 = por %p77, %p78
      %p80 = scmp.ne.s32.totalorder %s69, %s72
      %p81 = scmp.eq.s32.totalorder %s26, 7
      %p82 = por %p80, %p81
      %p83 = scmp.ne.s32.totalorder %s72, %s73
      %p84 = scmp.eq.s32.totalorder %s26, 0
      %p85 = por %p83, %p84
      %p86 = scmp.ne.s32.totalorder %s72, %s73
      %p87 = scmp.eq.s32.totalorder %s27, 7
      %p88 = por %p86, %p87
      %p90 = scmp.ne.s32.totalorder %s73, %s89
      %p91 = scmp.eq.s32.totalorder %s27, 0
      %p92 = por %p90, %p91
      %s93 = ssub.s32 %s28, %s40
      %p94 = scmp.eq.s32.totalorder %s93, 0
      %s96 = sadd.s32 %s95, 1
      %s97 = scalar_select %p94, %s95, %s96
      %p100 = pneg %p94
      %p101 = scmp.eq.s32.totalorder %s21, 7
      %p102 = por %p100, %p101
      %p103 = scmp.ne.s32.totalorder %s95, %s98
      %p104 = scmp.eq.s32.totalorder %s21, 0
      %p105 = por %p103, %p104
      %p106 = scmp.ne.s32.totalorder %s95, %s98
      %p107 = scmp.eq.s32.totalorder %s26, 7
      %p108 = por %p106, %p107
      %p109 = scmp.ne.s32.totalorder %s98, %s99
      %p110 = scmp.eq.s32.totalorder %s26, 0
      %p111 = por %p109, %p110
      %p112 = scmp.ne.s32.totalorder %s98, %s99
      %p113 = scmp.eq.s32.totalorder %s27, 7
      %p114 = por %p112, %p113
      %p116 = scmp.ne.s32.totalorder %s99, %s115
      %p117 = scmp.eq.s32.totalorder %s27, 0
      %p118 = por %p116, %p117
      %s119 = ssub.s32 %s28, %s40
      %p120 = scmp.eq.s32.totalorder %s119, 0
      %s122 = sadd.s32 %s121, 1
      %s123 = scalar_select %p120, %s121, %s122
      %p126 = pneg %p120
      %p127 = scmp.eq.s32.totalorder %s21, 7
      %p128 = por %p126, %p127
      %p129 = scmp.ne.s32.totalorder %s121, %s124
      %p130 = scmp.eq.s32.totalorder %s21, 0
      %p131 = por %p129, %p130
      %p132 = scmp.ne.s32.totalorder %s121, %s124
      %p133 = scmp.eq.s32.totalorder %s26, 7
      %p134 = por %p132, %p133
      %p135 = scmp.ne.s32.totalorder %s124, %s125
      %p136 = scmp.eq.s32.totalorder %s26, 0
      %p137 = por %p135, %p136
      %p138 = scmp.ne.s32.totalorder %s124, %s125
      %p139 = scmp.eq.s32.totalorder %s27, 7
      %p140 = por %p138, %p139
      %p142 = scmp.ne.s32.totalorder %s125, %s141
      %p143 = scmp.eq.s32.totalorder %s27, 0
      %p144 = por %p142, %p143
      %s145 = ssub.s32 %s28, %s40
      %p146 = scmp.eq.s32.totalorder %s145, 0
      %s148 = sadd.s32 %s147, 1
      %s149 = scalar_select %p146, %s147, %s148
      %p152 = pneg %p146
      %p153 = scmp.eq.s32.totalorder %s21, 7
      %p154 = por %p152, %p153
      %p155 = scmp.ne.s32.totalorder %s147, %s150
      %p156 = scmp.eq.s32.totalorder %s21, 0
      %p157 = por %p155, %p156
      %p158 = scmp.ne.s32.totalorder %s147, %s150
      %p159 = scmp.eq.s32.totalorder %s26, 7
      %p160 = por %p158, %p159
      %p161 = scmp.ne.s32.totalorder %s150, %s151
      %p162 = scmp.eq.s32.totalorder %s26, 0
      %p163 = por %p161, %p162
      %p164 = scmp.ne.s32.totalorder %s150, %s151
      %p165 = scmp.eq.s32.totalorder %s27, 7
      %p166 = por %p164, %p165
      %p168 = scmp.ne.s32.totalorder %s151, %s167
      %p169 = scmp.eq.s32.totalorder %s27, 0
      %p170 = por %p168, %p169
      %s171 = ssub.s32 %s29, %s36
      %s172 = ssub.s32 %s28, %s40
      %s173 = sor.u32 %s171, %s172
      %p174 = scmp.eq.s32.totalorder %s173, 0
      %s176 = sadd.s32 %s175, 1
      %s177 = scalar_select %p174, %s175, %s176
      %p180 = pneg %p174
      %p181 = scmp.eq.s32.totalorder %s21, 7
      %p182 = por %p180, %p181
      %p183 = scmp.ne.s32.totalorder %s175, %s178
      %p184 = scmp.eq.s32.totalorder %s21, 0
      %p185 = por %p183, %p184
      %p186 = scmp.ne.s32.totalorder %s175, %s178
      %p187 = scmp.eq.s32.totalorder %s26, 7
      %p188 = por %p186, %p187
      %p189 = scmp.ne.s32.totalorder %s178, %s179
      %p190 = scmp.eq.s32.totalorder %s26, 0
      %p191 = por %p189, %p190
      %p192 = scmp.ne.s32.totalorder %s178, %s179
      %p193 = scmp.eq.s32.totalorder %s27, 7
      %p194 = por %p192, %p193
      %p196 = scmp.ne.s32.totalorder %s179, %s195
      %p197 = scmp.eq.s32.totalorder %s27, 0
      %p198 = por %p196, %p197
      %s199 = ssub.s32 %s28, %s40
      %p200 = scmp.eq.s32.totalorder %s199, 0
      %s202 = sadd.s32 %s201, 1
      %s203 = scalar_select %p200, %s201, %s202
      %p206 = pneg %p200
      %p207 = scmp.eq.s32.totalorder %s21, 7
      %p208 = por %p206, %p207
      %p209 = scmp.ne.s32.totalorder %s201, %s204
      %p210 = scmp.eq.s32.totalorder %s21, 0
      %p211 = por %p209, %p210
      %p212 = scmp.ne.s32.totalorder %s201, %s204
      %p213 = scmp.eq.s32.totalorder %s26, 7
      %p214 = por %p212, %p213
      %p215 = scmp.ne.s32.totalorder %s204, %s205
      %p216 = scmp.eq.s32.totalorder %s26, 0
      %p217 = por %p215, %p216
      %p218 = scmp.ne.s32.totalorder %s204, %s205
      %p219 = scmp.eq.s32.totalorder %s27, 7
      %p220 = por %p218, %p219
      %p222 = scmp.ne.s32.totalorder %s205, %s221
      %p223 = scmp.eq.s32.totalorder %s27, 0
      %p224 = por %p222, %p223
      %p225 = scmp.le.s32.totalorder 1, %s21
      %p226 = scmp.lt.s32.totalorder %s21, 9
      %p227 = pnand %p225, %p226
      %p228 = pneg %p227
      // Predicated region
      $region9: #{tpu_custom_call.1} parent=5 // pred_check
        _
      $region10: #{tpu_custom_call.1} parent=5 // pred_check_branch
        %230 = sbr.rel (%p227) target = $region12
      $region11: #{tpu_custom_call.1} parent=5 // pred_region
        %s231 = ssub.s32 %s21, 1
        // Predicated region
        $region13: #{tpu_custom_call.1} parent=11 // pred_check
          %p232 = pneg %p85
        $region14: #{tpu_custom_call.1} parent=11 // pred_check_branch
          %234 = sbr.rel (%p232) target = $region16
        $region15: #{tpu_custom_call.1} parent=11 // pred_region
          %236 = vsyncadd [#allocation9], 0
          %s237 = smul.addr %s30, 8
          %s238 = scalar_lea.hbm %s1, %s237
          %s239 = sshll.u32 %s238, 4
          %s240 = int_to_ptr.hbm [resolvable:$true] %s239
          %s241 = sshll.u32 [#allocation8], 4
          %s242 = int_to_ptr.vmem [resolvable:$true] %s241
          %247 = dma.hbm_to_vmem [thread:$0]  %s240, 256, %s242, [#allocation9], 128, 128, 8
        $region16: #{tpu_custom_call.1} parent=11 // pred_fallthru
          _
        // Predicated region
        $region17: #{tpu_custom_call.1} parent=11 // pred_check
          %p248 = pneg %p111
        $region18: #{tpu_custom_call.1} parent=11 // pred_check_branch
          %250 = sbr.rel (%p248) target = $region20
        $region19: #{tpu_custom_call.1} parent=11 // pred_region
          %p251 = scmp.lt.s32.totalorder %s30, 0
          %s252 = scalar_select %p251, %s30, 0
          %s253 = scalar_lea.vmem %s2, %s252
        $region20: #{tpu_custom_call.1} parent=11 // pred_fallthru
          _
        // Predicated region
        $region21: #{tpu_custom_call.1} parent=11 // pred_check
          %p254 = pneg %p137
        $region22: #{tpu_custom_call.1} parent=11 // pred_check_branch
          %256 = sbr.rel (%p254) target = $region24
        $region23: #{tpu_custom_call.1} parent=11 // pred_region
          %p257 = scmp.lt.s32.totalorder %s30, 0
          %s258 = scalar_select %p257, %s30, 0
          %s259 = scalar_lea.vmem %s3, %s258
        $region24: #{tpu_custom_call.1} parent=11 // pred_fallthru
          _
        // Predicated region
        $region25: #{tpu_custom_call.1} parent=11 // pred_check
          %p260 = pneg %p163
        $region26: #{tpu_custom_call.1} parent=11 // pred_check_branch
          %262 = sbr.rel (%p260) target = $region28
        $region27: #{tpu_custom_call.1} parent=11 // pred_region
          %264 = vsyncadd [#allocation9], 0
          %s265 = smul.addr %s30, 8
          %s266 = scalar_lea.hbm %s4, %s265
          %s267 = sshll.u32 %s266, 4
          %s268 = int_to_ptr.hbm [resolvable:$true] %s267
          %s269 = sshll.u32 [#allocation10], 4
          %s270 = int_to_ptr.vmem [resolvable:$true] %s269
          %275 = dma.hbm_to_vmem [thread:$0]  %s268, 384, %s270, [#allocation9], 128, 128, 8
        $region28: #{tpu_custom_call.1} parent=11 // pred_fallthru
          _
      $region12: #{tpu_custom_call.1} parent=5 // pred_fallthru
        _
      %p276 = scmp.lt.s32.totalorder %s21, 8
      // Predicated region
      $region29: #{tpu_custom_call.1} parent=5 // pred_check
        %p277 = pneg %p276
      $region30: #{tpu_custom_call.1} parent=5 // pred_check_branch
        %279 = sbr.rel (%p277) target = $region32
      $region31: #{tpu_custom_call.1} parent=5 // pred_region
        // Predicated region
        $region33: #{tpu_custom_call.1} parent=31 // pred_check
          %p280 = pneg %p53
        $region34: #{tpu_custom_call.1} parent=31 // pred_check_branch
          %282 = sbr.rel (%p280) target = $region36
        $region35: #{tpu_custom_call.1} parent=31 // pred_region
          %s283 = sand.u32 %s43, 1
          %s284 = scalar_lea.sflag [#allocation6], %s283
          %s285 = sand.u32 %s43, 1
          %s286 = smul.addr %s285, 8
          %s287 = scalar_lea.vmem [#allocation5], %s286
          %289 = vsyncadd %s284, 0
          %s290 = smul.addr %s29, 8
          %s291 = scalar_lea.hbm %s0, %s290
          %s293 = sshll.u32 %s291, 4
          %s294 = int_to_ptr.hbm [resolvable:$true] %s293
          %s295 = sshll.u32 %s287, 4
          %s296 = int_to_ptr.vmem [resolvable:$true] %s295
          %298 = dma.hbm_to_vmem [thread:$0]  %s294, 128, %s296, %s284
        $region36: #{tpu_custom_call.1} parent=31 // pred_fallthru
          _
      $region32: #{tpu_custom_call.1} parent=5 // pred_fallthru
        _
      %p299 = scmp.le.s32.totalorder 1, %s21
      %p300 = scmp.lt.s32.totalorder %s21, 9
      %p301 = pnand %p299, %p300
      %p302 = pneg %p301
      // Predicated region
      $region37: #{tpu_custom_call.1} parent=5 // pred_check
        _
      $region38: #{tpu_custom_call.1} parent=5 // pred_check_branch
        %304 = sbr.rel (%p301) target = $region40
      $region39: #{tpu_custom_call.1} parent=5 // pred_region
        %s305 = ssub.s32 %s21, 1
        %s306 = sand.u32 %s46, 1
        %s307 = scalar_lea.sflag [#allocation6], %s306
        %s308 = sand.u32 %s46, 1
        %s309 = smul.addr %s308, 8
        %s310 = scalar_lea.vmem [#allocation5], %s309
        // Predicated region
        $region41: #{tpu_custom_call.1} parent=39 // pred_check
          %p311 = pneg %p59
        $region42: #{tpu_custom_call.1} parent=39 // pred_check_branch
          %313 = sbr.rel (%p311) target = $region44
        $region43: #{tpu_custom_call.1} parent=39 // pred_region
          %315 = dma.done %s307, 128
        $region44: #{tpu_custom_call.1} parent=39 // pred_fallthru
          _
        // Predicated region
        $region45: #{tpu_custom_call.1} parent=39 // pred_check
          %p316 = pneg %p85
        $region46: #{tpu_custom_call.1} parent=39 // pred_check_branch
          %318 = sbr.rel (%p316) target = $region48
        $region47: #{tpu_custom_call.1} parent=39 // pred_region
          %320 = dma.done [#allocation9], 256
        $region48: #{tpu_custom_call.1} parent=39 // pred_fallthru
          _
        // Predicated region
        $region49: #{tpu_custom_call.1} parent=39 // pred_check
          %p321 = pneg %p163
        $region50: #{tpu_custom_call.1} parent=39 // pred_check_branch
          %323 = sbr.rel (%p321) target = $region52
        $region51: #{tpu_custom_call.1} parent=39 // pred_region
          %325 = dma.done [#allocation9], 384
        $region52: #{tpu_custom_call.1} parent=39 // pred_fallthru
          _
        %s326 = sand.u32 %s46, 1
        %s327 = scalar_lea.sflag [#allocation6], %s326
        %s328 = sand.u32 %s46, 1
        %s329 = smul.addr %s328, 8
        %s330 = scalar_lea.vmem [#allocation5], %s329
        %p331 = pneg %p59
        %p332 = pneg %p56
        %p333 = pneg %p85
        %p334 = pneg %p82
        %p335 = scmp.lt.s32.totalorder %s30, 0
        %s336 = scalar_select %p335, %s30, 0
        %s337 = scalar_lea.vmem %s2, %s336
        %p338 = pneg %p111
        %p339 = pneg %p108
        %p340 = scmp.lt.s32.totalorder %s30, 0
        %s341 = scalar_select %p340, %s30, 0
        %s342 = scalar_lea.vmem %s3, %s341
        %p343 = pneg %p137
        %p344 = pneg %p134
        %p345 = pneg %p163
        %p346 = pneg %p160
        %p347 = pneg %p191
        %p348 = pneg %p188
        %s349 = sand.u32 %s178, 1
        %s350 = scalar_lea.sflag [#allocation7], %s349
        %s351 = sand.u32 %s178, 1
        %s352 = smul.addr %s351, 8
        %s353 = scalar_lea.vmem [#allocation11], %s352
        %p354 = pneg %p217
        %p355 = pneg %p214
        %p356 = scmp.lt.s32.totalorder %s30, 0
        %s357 = scalar_select %p356, %s30, 0
        %s358 = scalar_lea.vmem %s2, %s357
        %p359 = scmp.lt.s32.totalorder %s30, 0
        %s360 = scalar_select %p359, %s30, 0
        %s361 = scalar_lea.vmem %s3, %s360
        %p362 = scmp.eq.s32.totalorder %s31, 0
        // Predicated region
        $region53: #{tpu_custom_call.1} parent=39 // pred_check
          %p363 = pneg %p362
        $region54: #{tpu_custom_call.1} parent=39 // pred_check_branch
          %365 = sbr.rel (%p363) target = $region56
        $region55: #{tpu_custom_call.1} parent=39 // pred_region
          %v366 = vld [vmem:[#allocation10] sm:$0xff]
          %367 = vst [vmem:[#allocation2] sm:$0xff] %v366
          %s368 = scalar_lea.vmem [#allocation10], 8
          %v369 = vld [vmem:[%s368] sm:$0xff]
          %370 = vst [vmem:[#allocation3] sm:$0xff] %v369
          %s371 = scalar_lea.vmem [#allocation10], 16
          %v372 = vld [vmem:[%s371] sm:$0xff]
          %373 = vst [vmem:[#allocation4] sm:$0xff] %v372
        $region56: #{tpu_custom_call.1} parent=39 // pred_fallthru
          _
        %v374 = vld [vmem:[%s310] sm:$0xff]
        %v375 = vld [vmem:[#allocation8] sm:$0xff]
        %v376 = vld [vmem:[#allocation8 + $0x8] sm:$0xff]
        %vm377 = vcmask 130048
        %v379 = vsel %vm377, %v374, 0
        %381 = vmatpush.msra.mxu0 0.0
        %382 = vmatpush.msra.mxu0 0.0
        %383 = vmatpush.msra.mxu0 0.0
        %384 = vmatpush.msra.mxu0 0.0
        %385 = vmatpush.msra.mxu0 0.0
        %386 = vmatpush.msra.mxu0 0.0
        %387 = vmatpush.msra.mxu0 0.0
        %388 = vmatpush.msra.mxu0 0.0
        %389 = vmatpush.msra.mxu0 0.0
        %390 = vmatpush.msra.mxu0 0.0
        %391 = vmatpush.msra.mxu0 0.0
        %392 = vmatpush.msra.mxu0 0.0
        %393 = vmatpush.msra.mxu0 0.0
        %394 = vmatpush.msra.mxu0 0.0
        %395 = vmatpush.msra.mxu0 %v376
        %396 = vmatpush.msra.mxu0 %v375
        %397 = vmatmul.f32.gmra.mxu0 %v379
        %v398 = vpop.f32.mrf.mxu0
        %v399 = vadd.f32 0.0, %v398
        %400 = vdwg.mxu0
        %v401 = vld [vmem:[%s358] sm:$0x1]
        %v402 = vld [vmem:[%s361] sm:$0x1]
        %v403 = vld [vmem:[#allocation2] sm:$0xff]
        %v404 = vld [vmem:[#allocation3] sm:$0xff]
        %v405 = vld [vmem:[#allocation4] sm:$0xff]
        %v407 = vperm.slane %v402, 0
        %v409 = vadd.f32 %v407, %v405
        %v410 = vmul.f32 %v403, 0.01
        %v411 = vadd.f32 %v404, %v410
        %v412 = vmul.f32 %v399, 0.01
        %v413 = vadd.f32 %v403, %v412
        %v414 = vmul.f32 %v409, %v403
        %v415 = vmul.f32 %v414, 0.02
        %v416 = vsub.f32 %v413, %v415
        %v418 = vperm.slane %v401, 0
        %v420 = vmul.f32 %v418, %v411
        %v421 = vmul.f32 %v420, 0.01
        %v422 = vsub.f32 %v416, %v421
        %v423 = vsub.f32 %v422, 1.0
        %v424 = vsub.f32 %v423, %v405
        %vm425 = vcmp.gt.f32.partialorder %v424, 0.0
        %v426 = vsel %vm425, 1, 0
        %v427 = vcvt.s32.f32 %v426
        %v428 = vmul.f32 %v405, 0.9
        %v429 = vadd.f32 %v428, %v427
        %430 = vst [vmem:[#allocation2] sm:$0xff] %v422
        %431 = vst [vmem:[#allocation3] sm:$0xff] %v411
        %432 = vst [vmem:[#allocation4] sm:$0xff] %v429
        %433 = vst [vmem:[%s353] sm:$0xff] %v427
        %p434 = scmp.eq.s32.totalorder %s31, 7
        // Predicated region
        $region57: #{tpu_custom_call.1} parent=39 // pred_check
          %p435 = pneg %p434
        $region58: #{tpu_custom_call.1} parent=39 // pred_check_branch
          %437 = sbr.rel (%p435) target = $region60
        $region59: #{tpu_custom_call.1} parent=39 // pred_region
          %438 = vst [vmem:[#allocation12] sm:$0xff] %v422
          %s439 = scalar_lea.vmem [#allocation12], 8
          %440 = vst [vmem:[%s439] sm:$0xff] %v411
          %s441 = scalar_lea.vmem [#allocation12], 16
          %442 = vst [vmem:[%s441] sm:$0xff] %v429
        $region60: #{tpu_custom_call.1} parent=39 // pred_fallthru
          _
        %s443 = sand.u32 %s178, 1
        %s444 = scalar_lea.sflag [#allocation7], %s443
        %s445 = sand.u32 %s178, 1
        %s446 = smul.addr %s445, 8
        %s447 = scalar_lea.vmem [#allocation11], %s446
        // Predicated region
        $region61: #{tpu_custom_call.1} parent=39 // pred_check
          %p448 = pneg %p188
        $region62: #{tpu_custom_call.1} parent=39 // pred_check_branch
          %450 = sbr.rel (%p448) target = $region64
        $region63: #{tpu_custom_call.1} parent=39 // pred_region
          %452 = vsyncadd %s444, 0
          %s453 = sadd.s32 %s30, %s31
          %s454 = smul.addr %s453, 8
          %s455 = scalar_lea.hbm %s5, %s454
          %s457 = sshll.u32 %s447, 4
          %s458 = int_to_ptr.vmem [resolvable:$true] %s457
          %s459 = sshll.u32 %s455, 4
          %s460 = int_to_ptr.hbm [resolvable:$true] %s459
          %462 = dma.vmem_to_hbm [thread:$0]  %s458, 128, %s460, %s444
        $region64: #{tpu_custom_call.1} parent=39 // pred_fallthru
          _
        // Predicated region
        $region65: #{tpu_custom_call.1} parent=39 // pred_check
          %p463 = pneg %p214
        $region66: #{tpu_custom_call.1} parent=39 // pred_check_branch
          %465 = sbr.rel (%p463) target = $region68
        $region67: #{tpu_custom_call.1} parent=39 // pred_region
          %467 = vsyncadd [#allocation13], 0
          %s468 = smul.addr %s30, 8
          %s469 = scalar_lea.hbm %s6, %s468
          %s470 = sshll.u32 [#allocation12], 4
          %s471 = int_to_ptr.vmem [resolvable:$true] %s470
          %s472 = sshll.u32 %s469, 4
          %s473 = int_to_ptr.hbm [resolvable:$true] %s472
          %478 = dma.vmem_to_hbm [thread:$0]  %s471, 384, %s473, [#allocation13], 128, 128, 8
        $region68: #{tpu_custom_call.1} parent=39 // pred_fallthru
          _
        // Predicated region
        $region69: #{tpu_custom_call.1} parent=39 // pred_check
          %p479 = pneg %p214
        $region70: #{tpu_custom_call.1} parent=39 // pred_check_branch
          %481 = sbr.rel (%p479) target = $region72
        $region71: #{tpu_custom_call.1} parent=39 // pred_region
          %483 = dma.done [#allocation13], 384
        $region72: #{tpu_custom_call.1} parent=39 // pred_fallthru
          _
      $region40: #{tpu_custom_call.1} parent=5 // pred_fallthru
        _
      %p484 = scmp.le.s32.totalorder 2, %s21
      // Predicated region
      $region73: #{tpu_custom_call.1} parent=5 // pred_check
        %p485 = pneg %p484
      $region74: #{tpu_custom_call.1} parent=5 // pred_check_branch
        %487 = sbr.rel (%p485) target = $region76
      $region75: #{tpu_custom_call.1} parent=5 // pred_region
        %s488 = ssub.s32 %s21, 2
        // Predicated region
        $region77: #{tpu_custom_call.1} parent=75 // pred_check
          %p489 = pneg %p194
        $region78: #{tpu_custom_call.1} parent=75 // pred_check_branch
          %491 = sbr.rel (%p489) target = $region80
        $region79: #{tpu_custom_call.1} parent=75 // pred_region
          %s492 = sand.u32 %s179, 1
          %s493 = scalar_lea.sflag [#allocation7], %s492
          %s494 = sand.u32 %s179, 1
          %s495 = smul.addr %s494, 8
          %s496 = scalar_lea.vmem [#allocation11], %s495
          %498 = dma.done %s493, 128
        $region80: #{tpu_custom_call.1} parent=75 // pred_fallthru
          _
      $region76: #{tpu_custom_call.1} parent=5 // pred_fallthru
        _
    $region6: #{tpu_custom_call.1} parent=1 // loop_footer
      %s25 = sadd.s32 1, %s21
    $region7: #{tpu_custom_call.1} parent=1 // loop_footer_branch
      %20 = sbr.rel target = $region3
    $region8: #{tpu_custom_call.1} parent=1 // loop_exit
      _
    %499 = vsyncpa [#allocation6], 1
    %s500 = scalar_lea.sflag [#allocation6], 1
    %501 = vsyncpa %s500, 1
    %502 = vsyncpa [#allocation9], 1
    %503 = vsyncpa [#allocation7], 1
    %s504 = scalar_lea.sflag [#allocation7], 1
    %505 = vsyncpa %s504, 1
    %506 = vsyncpa [#allocation13], 1

</llo_original>
